<compile_context>
chip_gen: v7x
topology: tpu7x:2x2x1
jax: 0.10.0
libtpu: 0.0.40
codegen_flags: <defaults>
</compile_context>

<pallas_src>
import functools

import jax
import jax.numpy as jnp
from jax.experimental import pallas as pl
from jax.experimental.pallas import tpu as pltpu


def _round_up(x: int, m: int) -> int:
    return (x + m - 1) // m * m


# ----------------------------------------------------------------------------
# Pallas kernel: tiled normalize + scaled similarity + symmetric CE loss
# ----------------------------------------------------------------------------
def _siamese_loss_kernel(b_actual, tile, padded,
                         temp_ref, img_ref, txt_ref, loss_ref,
                         row_m_ref, row_l_ref, col_m_ref, col_l_ref, acc_ref):
    i = pl.program_id(0)          # image (row) tile
    j = pl.program_id(1)          # text (column) tile, innermost
    ni = pl.num_programs(0)
    nj = pl.num_programs(1)

    neg = jnp.float32(-1e30)      # finite "-inf" for masking padded rows/cols
    eps2 = jnp.float32(1e-24)     # == (1e-12)**2: clamp on the squared norm

    # --- L2 normalize with rsqrt (EUP); no VALU divides ----------------------
    img = img_ref[...]                                           # (T, Dp) f32
    txt = txt_ref[...]                                           # (T, Dp) f32
    img_n = img * jax.lax.rsqrt(
        jnp.maximum(jnp.sum(img * img, axis=1, keepdims=True), eps2))
    txt_n = txt * jax.lax.rsqrt(
        jnp.maximum(jnp.sum(txt * txt, axis=1, keepdims=True), eps2))

    # --- logit scale exp(temperature); unclamped to match the reference ------
    scale = jnp.exp(temp_ref[0])
    d_pad = img.shape[1]
    if d_pad <= tile:
        img_n = img_n * scale      # fold into the (T, D) operand (fewer elems)
        s_scale = None
    else:
        s_scale = scale            # cheaper to scale the (T, T) logits block

    # --- logits block on the MXU: bf16 operands, f32 acc, no transpose -------
    # (bf16 cast is an accuracy tradeoff; softmax/LSE math stays f32.)
    s = jax.lax.dot_general(
        img_n.astype(jnp.bfloat16), txt_n.astype(jnp.bfloat16),
        dimension_numbers=(((1,), (1,)), ((), ())),
        preferred_element_type=jnp.float32)                      # (T, T)
    if s_scale is not None:
        s = s * s_scale

    # --- mask padded rows/cols (only emitted when padding exists) ------------
    if padded:
        grow = i * tile + jax.lax.broadcasted_iota(jnp.int32, (tile, tile), 0)
        gcol = j * tile + jax.lax.broadcasted_iota(jnp.int32, (tile, tile), 1)
        s_row = jnp.where(gcol < b_actual, s, neg)   # for row-wise LSE
        s_col = jnp.where(grow < b_actual, s, neg)   # for column-wise LSE
    else:
        s_row = s
        s_col = s

    # --- init accumulators -----------------------------------------------------
    @pl.when((i == 0) & (j == 0))
    def _():
        acc_ref[...] = jnp.zeros_like(acc_ref)

    @pl.when(j == 0)
    def _():
        row_m_ref[...] = jnp.full_like(row_m_ref, -jnp.inf)
        row_l_ref[...] = jnp.zeros_like(row_l_ref)

    @pl.when(i == 0)
    def _():
        col_m_ref[j] = jnp.full((1, tile), -jnp.inf, jnp.float32)
        col_l_ref[j] = jnp.zeros((1, tile), jnp.float32)

    # --- online row LSE (image -> text direction) ------------------------------
    m_prev = row_m_ref[...]
    m_new = jnp.maximum(m_prev, jnp.max(s_row, axis=1, keepdims=True))
    row_l_ref[...] = (row_l_ref[...] * jnp.exp(m_prev - m_new)
                      + jnp.sum(jnp.exp(s_row - m_new), axis=1, keepdims=True))
    row_m_ref[...] = m_new

    # --- online column LSE (text -> image direction); state per column tile ----
    cm_prev = col_m_ref[j]
    cm_new = jnp.maximum(cm_prev, jnp.max(s_col, axis=0, keepdims=True))
    col_l_ref[j] = (col_l_ref[j] * jnp.exp(cm_prev - cm_new)
                    + jnp.sum(jnp.exp(s_col - cm_new), axis=0, keepdims=True))
    col_m_ref[j] = cm_new

    # --- trace of logits (only diagonal blocks contribute; TM == TN) -----------
    @pl.when(i == j)
    def _():
        diag = (jax.lax.broadcasted_iota(jnp.int32, (tile, tile), 0)
                == jax.lax.broadcasted_iota(jnp.int32, (tile, tile), 1))
        # padded diagonal entries are exactly 0 (zero rows), so no extra mask
        acc_ref[...] -= 2.0 * jnp.sum(jnp.where(diag, s, 0.0))

    # --- finish the row LSE of this row tile ------------------------------------
    @pl.when(j == nj - 1)
    def _():
        lse_r = row_m_ref[...] + jnp.log(row_l_ref[...])         # (T, 1)
        if padded:
            rid = i * tile + jax.lax.broadcasted_iota(jnp.int32, (tile, 1), 0)
            lse_r = jnp.where(rid < b_actual, lse_r, 0.0)
        acc_ref[...] += jnp.sum(lse_r)

    # --- final reduction: add column LSEs and emit the scalar loss -------------
    @pl.when((i == ni - 1) & (j == nj - 1))
    def _():
        lse_c = col_m_ref[...] + jnp.log(col_l_ref[...])         # (nj, 1, T)
        if padded:
            cid = (jax.lax.broadcasted_iota(jnp.int32, lse_c.shape, 0) * tile
                   + jax.lax.broadcasted_iota(jnp.int32, lse_c.shape, 2))
            lse_c = jnp.where(cid < b_actual, lse_c, 0.0)
        total = acc_ref[...] + jnp.sum(lse_c)
        # TODO(synk): route the scalar out through SMEM once scalar stores of
        # vector-reduced values are validated on all target generations; the
        # (1,1) VMEM store is a negligible cost and known to lower cleanly.
        loss_ref[...] = 0.5 * total / b_actual


def _siamese_loss(image_embedding, text_embedding, temperature):
    """Pads to tile-aligned shapes and runs the tiled Pallas loss kernel."""
    b, d = image_embedding.shape

    # 256 matches the v6e/v7x 256x256 MXU and is a multiple of v5e's 128x128;
    # tiny batches collapse to a single 8-aligned tile.
    tile = 256 if b >= 256 else _round_up(b, 8)
    bp = _round_up(b, tile)
    dp = _round_up(max(d, 128), 128)      # lane-dense contraction dim
    padded = bp != b
    n_blk = bp // tile

    img = image_embedding.astype(jnp.float32)
    txt = text_embedding.astype(jnp.float32)
    if (bp, dp) != (b, d):
        img = jnp.pad(img, ((0, bp - b), (0, dp - d)))
        txt = jnp.pad(txt, ((0, bp - b), (0, dp - d)))

    kernel = functools.partial(_siamese_loss_kernel, b, tile, padded)

    loss = pl.pallas_call(
        kernel,
        out_shape=jax.ShapeDtypeStruct((1, 1), jnp.float32),
        grid=(n_blk, n_blk),
        in_specs=[
            pl.BlockSpec(memory_space=pltpu.MemorySpace.SMEM),    # temperature
            pl.BlockSpec((tile, dp), lambda i, j: (i, 0)),        # image rows
            pl.BlockSpec((tile, dp), lambda i, j: (j, 0)),        # text rows
        ],
        out_specs=pl.BlockSpec((1, 1), lambda i, j: (0, 0)),
        scratch_shapes=[
            pltpu.VMEM((tile, 1), jnp.float32),         # row running max
            pltpu.VMEM((tile, 1), jnp.float32),         # row running sum-exp
            pltpu.VMEM((n_blk, 1, tile), jnp.float32),  # col running max
            pltpu.VMEM((n_blk, 1, tile), jnp.float32),  # col running sum-exp
            pltpu.VMEM((1, 1), jnp.float32),            # scalar accumulator
        ],
        compiler_params=pltpu.CompilerParams(
            # Both grid axes carry accumulator state -> sequential.
            # TODO(synk): shard the row axis across v7x's two TensorCores by
            # keeping per-core column-LSE partials and combining them.
            dimension_semantics=("arbitrary", "arbitrary"),
            # Blocks are sized well under v7x's 64 MiB VMEM; give headroom.
            vmem_limit_bytes=64 * 1024 * 1024,
        ),
    )(temperature, img, txt)
    return loss[0, 0]


# ----------------------------------------------------------------------------
# Synthetic encoders (glue, plain JAX) + full forward
# ----------------------------------------------------------------------------
def make_params(key, in_features, seq_vocab, embed_dim):
    k1, k2, k3, k4, k5 = jax.random.split(key, 5)
    return {
        "img_w": jax.random.normal(k1, (in_features, embed_dim), jnp.float32) * 0.02,
        "img_b": jax.random.normal(k2, (embed_dim,), jnp.float32) * 0.02,
        "tok_emb": jax.random.normal(k3, (seq_vocab, embed_dim), jnp.float32) * 0.02,
        "txt_w": jax.random.normal(k4, (embed_dim, embed_dim), jnp.float32) * 0.02,
        "txt_b": jax.random.normal(k5, (embed_dim,), jnp.float32) * 0.02,
        # nn.Parameter(torch.tensor(1.0)) -- exp(temperature) is unclamped to
        # match the reference module (flagged: CLIP usually clamps the scale).
        "temperature": jnp.ones((1,), jnp.float32),
    }


@jax.jit
def symmetric_siamese_forward(params, anchor_image, text_input_ids,
                              text_attention_mask):
    b = anchor_image.shape[0]

    # --- image encoder (synthetic, external module in the spec) ---
    img_flat = anchor_image.reshape(b, -1)
    image_embedding = img_flat @ params["img_w"] + params["img_b"]

    # --- text encoder (synthetic, external module in the spec) ---
    tok = params["tok_emb"][text_input_ids]                       # (B, S, D)
    mask = text_attention_mask[..., None].astype(jnp.float32)     # (B, S, 1)
    pooled = jnp.sum(tok * mask, axis=1) / jnp.maximum(jnp.sum(mask, axis=1), 1.0)
    text_embedding = pooled @ params["txt_w"] + params["txt_b"]

    # --- SymmetricSiameseModel.forward hot path: Pallas kernel ---
    loss = _siamese_loss(image_embedding, text_embedding, params["temperature"])

    # TripletOutput(loss, anchor_embedding, positive_embedding)
    return loss, image_embedding, text_embedding


def _reference_loss(image_embedding, text_embedding, temperature):
    """Pure-JAX f32 reference of the kernel for validation."""
    eps = 1e-12
    img_n = image_embedding / jnp.maximum(
        jnp.linalg.norm(image_embedding, axis=1, keepdims=True), eps)
    txt_n = text_embedding / jnp.maximum(
        jnp.linalg.norm(text_embedding, axis=1, keepdims=True), eps)
    logits = img_n @ txt_n.T * jnp.exp(temperature[0])
    labels = jnp.arange(logits.shape[0])
    lp_r = jax.nn.log_softmax(logits, axis=1)
    lp_c = jax.nn.log_softmax(logits, axis=0)
    return 0.5 * (-jnp.mean(lp_r[labels, labels]) - jnp.mean(lp_c[labels, labels]))


if __name__ == "__main__":
    key = jax.random.PRNGKey(0)
    k_img, k_ids, k_mask, k_params, k_big = jax.random.split(key, 5)

    B, C, H, W = 2, 4, 16, 16      # anchor_image: NCHW
    S, VOCAB, D = 8, 64, 32        # text seq / vocab / embedding dim

    anchor_image = jax.random.normal(k_img, (B, C, H, W), jnp.float32)
    text_input_ids = jax.random.randint(k_ids, (B, S), 0, VOCAB, jnp.int32)
    text_attention_mask = (jax.random.uniform(k_mask, (B, S)) > 0.2).astype(jnp.int32)

    params = make_params(k_params, C * H * W, VOCAB, D)

    loss, anchor_emb, positive_emb = symmetric_siamese_forward(
        params, anchor_image, text_input_ids, text_attention_mask)
    jax.block_until_ready((loss, anchor_emb, positive_emb))

    # Validate against the pure-f32 reference (bf16 MXU operands => looser tol).
    ref = _reference_loss(anchor_emb, positive_emb, params["temperature"])
    assert jnp.allclose(loss, ref, atol=2e-2, rtol=0.0), (loss, ref)
    assert anchor_emb.shape == (B, D) and positive_emb.shape == (B, D)

    # Exercise the multi-tile (2x2 grid) + batch-padding path of the kernel.
    kb1, kb2 = jax.random.split(k_big)
    Bb, Db = 300, 64
    big_img = jax.random.normal(kb1, (Bb, Db), jnp.float32)
    big_txt = jax.random.normal(kb2, (Bb, Db), jnp.float32)
    big_loss = _siamese_loss(big_img, big_txt, params["temperature"])
    jax.block_until_ready(big_loss)
    big_ref = _reference_loss(big_img, big_txt, params["temperature"])
    assert jnp.allclose(big_loss, big_ref, atol=5e-2, rtol=0.0), (big_loss, big_ref)

    print("KERNEL_OK")
</pallas_src>

<mosaic_0001>
module attributes {stable_mosaic.version = 11 : i64} {
  func.func @_siamese_loss_kernel(%arg0: i32, %arg1: i32, %arg2: memref<1xf32, #tpu.memory_space<smem>>, %arg3: memref<8x128xf32, #tpu.memory_space<vmem>>, %arg4: memref<8x128xf32, #tpu.memory_space<vmem>>, %arg5: memref<1x1xf32, #tpu.memory_space<vmem>>, %arg6: memref<8x1xf32, #tpu.memory_space<vmem>>, %arg7: memref<8x1xf32, #tpu.memory_space<vmem>>, %arg8: memref<1x1x8xf32, #tpu.memory_space<vmem>>, %arg9: memref<1x1x8xf32, #tpu.memory_space<vmem>>, %arg10: memref<1x1xf32, #tpu.memory_space<vmem>>) attributes {dimension_semantics = [#tpu.dimension_semantics<arbitrary>, #tpu.dimension_semantics<arbitrary>], iteration_bounds = array<i64: 1, 1>, scalar_prefetch = 0 : i64, scratch_operands = 5 : i64, tpu.core_type = #tpu.core_type<tc>, window_params = [{transform_indices = @transform_0, window_bounds = array<i64: 1>}, {transform_indices = @transform_1, window_bounds = array<i64: 8, 128>}, {transform_indices = @transform_2, window_bounds = array<i64: 8, 128>}, {pipeline_mode = #tpu.pipeline_mode<synchronous>, transform_indices = @transform_3, window_bounds = array<i64: 1, 1>}]} {
    %c0 = arith.constant 0 : index
    %c0_0 = arith.constant 0 : index
    %0 = vector.load %arg3[%c0, %c0_0] : memref<8x128xf32, #tpu.memory_space<vmem>>, vector<8x128xf32>
    %c0_1 = arith.constant 0 : index
    %c0_2 = arith.constant 0 : index
    %1 = vector.load %arg4[%c0_1, %c0_2] : memref<8x128xf32, #tpu.memory_space<vmem>>, vector<8x128xf32>
    %2 = arith.mulf %0, %0 : vector<8x128xf32>
    %cst = arith.constant dense<0.000000e+00> : vector<8xf32>
    %3 = vector.multi_reduction <add>, %2, %cst [1] : vector<8x128xf32> to vector<8xf32>
    %4 = vector.shape_cast %3 : vector<8xf32> to vector<8x1xf32>
    %cst_3 = arith.constant 1.000000e-24 : f32
    %5 = vector.broadcast %cst_3 : f32 to vector<8x1xf32>
    %6 = arith.maximumf %4, %5 : vector<8x1xf32>
    %7 = math.rsqrt %6 : vector<8x1xf32>
    %8 = vector.broadcast %7 : vector<8x1xf32> to vector<8x128xf32>
    %9 = arith.mulf %0, %8 : vector<8x128xf32>
    %10 = arith.mulf %1, %1 : vector<8x128xf32>
    %cst_4 = arith.constant dense<0.000000e+00> : vector<8xf32>
    %11 = vector.multi_reduction <add>, %10, %cst_4 [1] : vector<8x128xf32> to vector<8xf32>
    %12 = vector.shape_cast %11 : vector<8xf32> to vector<8x1xf32>
    %cst_5 = arith.constant 1.000000e-24 : f32
    %13 = vector.broadcast %cst_5 : f32 to vector<8x1xf32>
    %14 = arith.maximumf %12, %13 : vector<8x1xf32>
    %15 = math.rsqrt %14 : vector<8x1xf32>
    %16 = vector.broadcast %15 : vector<8x1xf32> to vector<8x128xf32>
    %17 = arith.mulf %1, %16 : vector<8x128xf32>
    %c0_6 = arith.constant 0 : index
    %18 = memref.load %arg2[%c0_6] : memref<1xf32, #tpu.memory_space<smem>>
    %19 = math.exp %18 : f32
    %20 = arith.truncf %9 : vector<8x128xf32> to vector<8x128xbf16>
    %21 = arith.truncf %17 : vector<8x128xf32> to vector<8x128xbf16>
    %cst_7 = arith.constant dense<0.000000e+00> : vector<8x8xf32>
    %22 = tpu.matmul %20, %21, %cst_7 {dimension_numbers = #tpu.dot_dimension_numbers<[1], [1], [0], [0], [0, 0, 1, 0], [], []>} : vector<8x128xbf16>, vector<8x128xbf16>, vector<8x8xf32> -> vector<8x8xf32>
    %23 = vector.broadcast %19 : f32 to vector<8x8xf32>
    %24 = arith.mulf %22, %23 : vector<8x8xf32>
    %c8_i32 = arith.constant 8 : i32
    %25 = arith.muli %arg0, %c8_i32 : i32
    %26 = tpu.iota {dimensions = array<i32: 0>} : vector<8x8xi32>
    %27 = vector.broadcast %25 : i32 to vector<8x8xi32>
    %28 = arith.addi %27, %26 : vector<8x8xi32>
    %c8_i32_8 = arith.constant 8 : i32
    %29 = arith.muli %arg1, %c8_i32_8 : i32
    %30 = tpu.iota {dimensions = array<i32: 1>} : vector<8x8xi32>
    %31 = vector.broadcast %29 : i32 to vector<8x8xi32>
    %32 = arith.addi %31, %30 : vector<8x8xi32>
    %c2_i32 = arith.constant 2 : i32
    %33 = vector.broadcast %c2_i32 : i32 to vector<8x8xi32>
    %34 = arith.cmpi slt, %32, %33 : vector<8x8xi32>
    %cst_9 = arith.constant -1.000000e+30 : f32
    %35 = vector.broadcast %cst_9 : f32 to vector<8x8xf32>
    %36 = arith.select %34, %24, %35 : vector<8x8xi1>, vector<8x8xf32>
    %c2_i32_10 = arith.constant 2 : i32
    %37 = vector.broadcast %c2_i32_10 : i32 to vector<8x8xi32>
    %38 = arith.cmpi slt, %28, %37 : vector<8x8xi32>
    %cst_11 = arith.constant -1.000000e+30 : f32
    %39 = vector.broadcast %cst_11 : f32 to vector<8x8xf32>
    %40 = arith.select %38, %24, %39 : vector<8x8xi1>, vector<8x8xf32>
    %c0_i32 = arith.constant 0 : i32
    %41 = arith.cmpi eq, %arg0, %c0_i32 : i32
    %c0_i32_12 = arith.constant 0 : i32
    %42 = arith.cmpi eq, %arg1, %c0_i32_12 : i32
    %43 = arith.andi %41, %42 : i1
    %44 = arith.extui %43 : i1 to i32
    %c0_i32_13 = arith.constant 0 : i32
    %45 = arith.cmpi ne, %44, %c0_i32_13 : i32
    scf.if %45 {
      %cst_44 = arith.constant 0.000000e+00 : f32
      %105 = vector.broadcast %cst_44 : f32 to vector<1x1xf32>
      %c0_45 = arith.constant 0 : index
      %c0_46 = arith.constant 0 : index
      %106 = vector.load %arg10[%c0_45, %c0_46] : memref<1x1xf32, #tpu.memory_space<vmem>>, vector<1x1xf32>
      tpu.vector_store %arg10[%c0_45, %c0_46], %105 {strides = array<i32>} : memref<1x1xf32, #tpu.memory_space<vmem>>, vector<1x1xf32>,
    } else {
    }
    %c0_i32_14 = arith.constant 0 : i32
    %46 = arith.cmpi eq, %arg1, %c0_i32_14 : i32
    %47 = arith.extui %46 : i1 to i32
    %c0_i32_15 = arith.constant 0 : i32
    %48 = arith.cmpi ne, %47, %c0_i32_15 : i32
    scf.if %48 {
      %cst_44 = arith.constant 0xFF800000 : f32
      %105 = vector.broadcast %cst_44 : f32 to vector<8x1xf32>
      %c0_45 = arith.constant 0 : index
      %c0_46 = arith.constant 0 : index
      %106 = vector.load %arg6[%c0_45, %c0_46] : memref<8x1xf32, #tpu.memory_space<vmem>>, vector<8x1xf32>
      tpu.vector_store %arg6[%c0_45, %c0_46], %105 {strides = array<i32>} : memref<8x1xf32, #tpu.memory_space<vmem>>, vector<8x1xf32>,
      %cst_47 = arith.constant 0.000000e+00 : f32
      %107 = vector.broadcast %cst_47 : f32 to vector<8x1xf32>
      %c0_48 = arith.constant 0 : index
      %c0_49 = arith.constant 0 : index
      %108 = vector.load %arg7[%c0_48, %c0_49] : memref<8x1xf32, #tpu.memory_space<vmem>>, vector<8x1xf32>
      tpu.vector_store %arg7[%c0_48, %c0_49], %107 {strides = array<i32>} : memref<8x1xf32, #tpu.memory_space<vmem>>, vector<8x1xf32>,
    } else {
    }
    %c0_i32_16 = arith.constant 0 : i32
    %49 = arith.cmpi eq, %arg0, %c0_i32_16 : i32
    %50 = arith.extui %49 : i1 to i32
    %c0_i32_17 = arith.constant 0 : i32
    %51 = arith.cmpi ne, %50, %c0_i32_17 : i32
    scf.if %51 {
      %cst_44 = arith.constant 0xFF800000 : f32
      %105 = vector.broadcast %cst_44 : f32 to vector<1x8xf32>
      %106 = arith.index_cast %arg1 : i32 to index
      %c0_45 = arith.constant 0 : index
      %c0_46 = arith.constant 0 : index
      %107 = vector.load %arg8[%106, %c0_45, %c0_46] : memref<1x1x8xf32, #tpu.memory_space<vmem>>, vector<1x1x8xf32>
      %108 = vector.shape_cast %107 : vector<1x1x8xf32> to vector<1x8xf32>
      %109 = vector.shape_cast %105 : vector<1x8xf32> to vector<1x1x8xf32>
      tpu.vector_store %arg8[%106, %c0_45, %c0_46], %109 {strides = array<i32>} : memref<1x1x8xf32, #tpu.memory_space<vmem>>, vector<1x1x8xf32>,
      %cst_47 = arith.constant 0.000000e+00 : f32
      %110 = vector.broadcast %cst_47 : f32 to vector<1x8xf32>
      %111 = arith.index_cast %arg1 : i32 to index
      %c0_48 = arith.constant 0 : index
      %c0_49 = arith.constant 0 : index
      %112 = vector.load %arg9[%111, %c0_48, %c0_49] : memref<1x1x8xf32, #tpu.memory_space<vmem>>, vector<1x1x8xf32>
      %113 = vector.shape_cast %112 : vector<1x1x8xf32> to vector<1x8xf32>
      %114 = vector.shape_cast %110 : vector<1x8xf32> to vector<1x1x8xf32>
      tpu.vector_store %arg9[%111, %c0_48, %c0_49], %114 {strides = array<i32>} : memref<1x1x8xf32, #tpu.memory_space<vmem>>, vector<1x1x8xf32>,
    } else {
    }
    %c0_18 = arith.constant 0 : index
    %c0_19 = arith.constant 0 : index
    %52 = vector.load %arg6[%c0_18, %c0_19] : memref<8x1xf32, #tpu.memory_space<vmem>>, vector<8x1xf32>
    %cst_20 = arith.constant dense<0xFF800000> : vector<8xf32>
    %53 = vector.multi_reduction <maximumf>, %36, %cst_20 [1] : vector<8x8xf32> to vector<8xf32>
    %54 = vector.shape_cast %53 : vector<8xf32> to vector<8x1xf32>
    %55 = arith.maximumf %52, %54 : vector<8x1xf32>
    %c0_21 = arith.constant 0 : index
    %c0_22 = arith.constant 0 : index
    %56 = vector.load %arg7[%c0_21, %c0_22] : memref<8x1xf32, #tpu.memory_space<vmem>>, vector<8x1xf32>
    %57 = arith.subf %52, %55 : vector<8x1xf32>
    %58 = math.exp %57 : vector<8x1xf32>
    %59 = arith.mulf %56, %58 : vector<8x1xf32>
    %60 = vector.broadcast %55 : vector<8x1xf32> to vector<8x8xf32>
    %61 = arith.subf %36, %60 : vector<8x8xf32>
    %62 = math.exp %61 : vector<8x8xf32>
    %cst_23 = arith.constant dense<0.000000e+00> : vector<8xf32>
    %63 = vector.multi_reduction <add>, %62, %cst_23 [1] : vector<8x8xf32> to vector<8xf32>
    %64 = vector.shape_cast %63 : vector<8xf32> to vector<8x1xf32>
    %65 = arith.addf %59, %64 : vector<8x1xf32>
    %c0_24 = arith.constant 0 : index
    %c0_25 = arith.constant 0 : index
    %66 = vector.load %arg7[%c0_24, %c0_25] : memref<8x1xf32, #tpu.memory_space<vmem>>, vector<8x1xf32>
    tpu.vector_store %arg7[%c0_24, %c0_25], %65 {strides = array<i32>} : memref<8x1xf32, #tpu.memory_space<vmem>>, vector<8x1xf32>,
    %c0_26 = arith.constant 0 : index
    %c0_27 = arith.constant 0 : index
    %67 = vector.load %arg6[%c0_26, %c0_27] : memref<8x1xf32, #tpu.memory_space<vmem>>, vector<8x1xf32>
    tpu.vector_store %arg6[%c0_26, %c0_27], %55 {strides = array<i32>} : memref<8x1xf32, #tpu.memory_space<vmem>>, vector<8x1xf32>,
    %68 = arith.index_cast %arg1 : i32 to index
    %c0_28 = arith.constant 0 : index
    %c0_29 = arith.constant 0 : index
    %69 = vector.load %arg8[%68, %c0_28, %c0_29] : memref<1x1x8xf32, #tpu.memory_space<vmem>>, vector<1x1x8xf32>
    %70 = vector.shape_cast %69 : vector<1x1x8xf32> to vector<1x8xf32>
    %cst_30 = arith.constant dense<0xFF800000> : vector<8xf32>
    %71 = vector.multi_reduction <maximumf>, %40, %cst_30 [0] : vector<8x8xf32> to vector<8xf32>
    %72 = vector.shape_cast %71 : vector<8xf32> to vector<1x8xf32>
    %73 = arith.maximumf %70, %72 : vector<1x8xf32>
    %74 = arith.index_cast %arg1 : i32 to index
    %c0_31 = arith.constant 0 : index
    %c0_32 = arith.constant 0 : index
    %75 = vector.load %arg9[%74, %c0_31, %c0_32] : memref<1x1x8xf32, #tpu.memory_space<vmem>>, vector<1x1x8xf32>
    %76 = vector.shape_cast %75 : vector<1x1x8xf32> to vector<1x8xf32>
    %77 = arith.subf %70, %73 : vector<1x8xf32>
    %78 = math.exp %77 : vector<1x8xf32>
    %79 = arith.mulf %76, %78 : vector<1x8xf32>
    %80 = vector.broadcast %73 : vector<1x8xf32> to vector<8x8xf32>
    %81 = arith.subf %40, %80 : vector<8x8xf32>
    %82 = math.exp %81 : vector<8x8xf32>
    %cst_33 = arith.constant dense<0.000000e+00> : vector<8xf32>
    %83 = vector.multi_reduction <add>, %82, %cst_33 [0] : vector<8x8xf32> to vector<8xf32>
    %84 = vector.shape_cast %83 : vector<8xf32> to vector<1x8xf32>
    %85 = arith.addf %79, %84 : vector<1x8xf32>
    %86 = arith.index_cast %arg1 : i32 to index
    %c0_34 = arith.constant 0 : index
    %c0_35 = arith.constant 0 : index
    %87 = vector.load %arg9[%86, %c0_34, %c0_35] : memref<1x1x8xf32, #tpu.memory_space<vmem>>, vector<1x1x8xf32>
    %88 = vector.shape_cast %87 : vector<1x1x8xf32> to vector<1x8xf32>
    %89 = vector.shape_cast %85 : vector<1x8xf32> to vector<1x1x8xf32>
    tpu.vector_store %arg9[%86, %c0_34, %c0_35], %89 {strides = array<i32>} : memref<1x1x8xf32, #tpu.memory_space<vmem>>, vector<1x1x8xf32>,
    %90 = arith.index_cast %arg1 : i32 to index
    %c0_36 = arith.constant 0 : index
    %c0_37 = arith.constant 0 : index
    %91 = vector.load %arg8[%90, %c0_36, %c0_37] : memref<1x1x8xf32, #tpu.memory_space<vmem>>, vector<1x1x8xf32>
    %92 = vector.shape_cast %91 : vector<1x1x8xf32> to vector<1x8xf32>
    %93 = vector.shape_cast %73 : vector<1x8xf32> to vector<1x1x8xf32>
    tpu.vector_store %arg8[%90, %c0_36, %c0_37], %93 {strides = array<i32>} : memref<1x1x8xf32, #tpu.memory_space<vmem>>, vector<1x1x8xf32>,
    %94 = arith.cmpi eq, %arg0, %arg1 : i32
    %95 = arith.extui %94 : i1 to i32
    %c0_i32_38 = arith.constant 0 : i32
    %96 = arith.cmpi ne, %95, %c0_i32_38 : i32
    scf.if %96 {
      %105 = tpu.iota {dimensions = array<i32: 0>} : vector<8x8xi32>
      %106 = tpu.iota {dimensions = array<i32: 1>} : vector<8x8xi32>
      %107 = arith.cmpi eq, %105, %106 : vector<8x8xi32>
      %c0_44 = arith.constant 0 : index
      %c0_45 = arith.constant 0 : index
      %108 = vector.load %arg10[%c0_44, %c0_45] : memref<1x1xf32, #tpu.memory_space<vmem>>, vector<1x1xf32>
      %cst_46 = arith.constant 0.000000e+00 : f32
      %109 = vector.broadcast %cst_46 : f32 to vector<8x8xf32>
      %110 = arith.select %107, %24, %109 : vector<8x8xi1>, vector<8x8xf32>
      %111 = vector.shape_cast %110 : vector<8x8xf32> to vector<1x8x8xf32>
      %cst_47 = arith.constant dense<0.000000e+00> : vector<1xf32>
      %112 = vector.multi_reduction <add>, %111, %cst_47 [1, 2] : vector<1x8x8xf32> to vector<1xf32>
      %113 = vector.shape_cast %112 : vector<1xf32> to vector<1x1x1xf32>
      %114 = vector.extract %113[0, 0, 0] : f32 from vector<1x1x1xf32>
      %cst_48 = arith.constant 2.000000e+00 : f32
      %115 = arith.mulf %cst_48, %114 : f32
      %116 = vector.broadcast %115 : f32 to vector<1x1xf32>
      %117 = arith.subf %108, %116 : vector<1x1xf32>
      %c0_49 = arith.constant 0 : index
      %c0_50 = arith.constant 0 : index
      %118 = vector.load %arg10[%c0_49, %c0_50] : memref<1x1xf32, #tpu.memory_space<vmem>>, vector<1x1xf32>
      tpu.vector_store %arg10[%c0_49, %c0_50], %117 {strides = array<i32>} : memref<1x1xf32, #tpu.memory_space<vmem>>, vector<1x1xf32>,
    } else {
    }
    %c0_i32_39 = arith.constant 0 : i32
    %97 = arith.cmpi eq, %arg1, %c0_i32_39 : i32
    %98 = arith.extui %97 : i1 to i32
    %c0_i32_40 = arith.constant 0 : i32
    %99 = arith.cmpi ne, %98, %c0_i32_40 : i32
    scf.if %99 {
      %c0_44 = arith.constant 0 : index
      %c0_45 = arith.constant 0 : index
      %105 = vector.load %arg6[%c0_44, %c0_45] : memref<8x1xf32, #tpu.memory_space<vmem>>, vector<8x1xf32>
      %c0_46 = arith.constant 0 : index
      %c0_47 = arith.constant 0 : index
      %106 = vector.load %arg7[%c0_46, %c0_47] : memref<8x1xf32, #tpu.memory_space<vmem>>, vector<8x1xf32>
      %107 = math.log %106 : vector<8x1xf32>
      %108 = arith.addf %105, %107 : vector<8x1xf32>
      %c8_i32_48 = arith.constant 8 : i32
      %109 = arith.muli %arg0, %c8_i32_48 : i32
      %110 = tpu.iota {dimensions = array<i32: 0>} : vector<8x1xi32>
      %111 = vector.broadcast %109 : i32 to vector<8x1xi32>
      %112 = arith.addi %111, %110 : vector<8x1xi32>
      %c2_i32_49 = arith.constant 2 : i32
      %113 = vector.broadcast %c2_i32_49 : i32 to vector<8x1xi32>
      %114 = arith.cmpi slt, %112, %113 : vector<8x1xi32>
      %cst_50 = arith.constant 0.000000e+00 : f32
      %115 = vector.broadcast %cst_50 : f32 to vector<8x1xf32>
      %116 = arith.select %114, %108, %115 : vector<8x1xi1>, vector<8x1xf32>
      %c0_51 = arith.constant 0 : index
      %c0_52 = arith.constant 0 : index
      %117 = vector.load %arg10[%c0_51, %c0_52] : memref<1x1xf32, #tpu.memory_space<vmem>>, vector<1x1xf32>
      %118 = vector.shape_cast %116 : vector<8x1xf32> to vector<1x8x1xf32>
      %cst_53 = arith.constant dense<0.000000e+00> : vector<1xf32>
      %119 = vector.multi_reduction <add>, %118, %cst_53 [1, 2] : vector<1x8x1xf32> to vector<1xf32>
      %120 = vector.shape_cast %119 : vector<1xf32> to vector<1x1x1xf32>
      %121 = vector.extract %120[0, 0, 0] : f32 from vector<1x1x1xf32>
      %122 = vector.broadcast %121 : f32 to vector<1x1xf32>
      %123 = arith.addf %117, %122 : vector<1x1xf32>
      %c0_54 = arith.constant 0 : index
      %c0_55 = arith.constant 0 : index
      %124 = vector.load %arg10[%c0_54, %c0_55] : memref<1x1xf32, #tpu.memory_space<vmem>>, vector<1x1xf32>
      tpu.vector_store %arg10[%c0_54, %c0_55], %123 {strides = array<i32>} : memref<1x1xf32, #tpu.memory_space<vmem>>, vector<1x1xf32>,
    } else {
    }
    %c0_i32_41 = arith.constant 0 : i32
    %100 = arith.cmpi eq, %arg0, %c0_i32_41 : i32
    %c0_i32_42 = arith.constant 0 : i32
    %101 = arith.cmpi eq, %arg1, %c0_i32_42 : i32
    %102 = arith.andi %100, %101 : i1
    %103 = arith.extui %102 : i1 to i32
    %c0_i32_43 = arith.constant 0 : i32
    %104 = arith.cmpi ne, %103, %c0_i32_43 : i32
    scf.if %104 {
      %c0_44 = arith.constant 0 : index
      %c0_45 = arith.constant 0 : index
      %c0_46 = arith.constant 0 : index
      %105 = vector.load %arg8[%c0_44, %c0_45, %c0_46] : memref<1x1x8xf32, #tpu.memory_space<vmem>>, vector<1x1x8xf32>
      %c0_47 = arith.constant 0 : index
      %c0_48 = arith.constant 0 : index
      %c0_49 = arith.constant 0 : index
      %106 = vector.load %arg9[%c0_47, %c0_48, %c0_49] : memref<1x1x8xf32, #tpu.memory_space<vmem>>, vector<1x1x8xf32>
      %107 = math.log %106 : vector<1x1x8xf32>
      %108 = arith.addf %105, %107 : vector<1x1x8xf32>
      %109 = tpu.iota {dimensions = array<i32: 0>} : vector<1x1x8xi32>
      %c8_i32_50 = arith.constant 8 : i32
      %110 = vector.broadcast %c8_i32_50 : i32 to vector<1x1x8xi32>
      %111 = arith.muli %109, %110 : vector<1x1x8xi32>
      %112 = tpu.iota {dimensions = array<i32: 2>} : vector<1x1x8xi32>
      %113 = arith.addi %111, %112 : vector<1x1x8xi32>
      %c2_i32_51 = arith.constant 2 : i32
      %114 = vector.broadcast %c2_i32_51 : i32 to vector<1x1x8xi32>
      %115 = arith.cmpi slt, %113, %114 : vector<1x1x8xi32>
      %cst_52 = arith.constant 0.000000e+00 : f32
      %116 = vector.broadcast %cst_52 : f32 to vector<1x1x8xf32>
      %117 = arith.select %115, %108, %116 : vector<1x1x8xi1>, vector<1x1x8xf32>
      %c0_53 = arith.constant 0 : index
      %c0_54 = arith.constant 0 : index
      %118 = vector.load %arg10[%c0_53, %c0_54] : memref<1x1xf32, #tpu.memory_space<vmem>>, vector<1x1xf32>
      %119 = vector.shape_cast %117 : vector<1x1x8xf32> to vector<1x1x1x8xf32>
      %cst_55 = arith.constant dense<0.000000e+00> : vector<1xf32>
      %120 = vector.multi_reduction <add>, %119, %cst_55 [1, 2, 3] : vector<1x1x1x8xf32> to vector<1xf32>
      %121 = vector.shape_cast %120 : vector<1xf32> to vector<1x1x1x1xf32>
      %122 = vector.extract %121[0, 0, 0, 0] : f32 from vector<1x1x1x1xf32>
      %123 = vector.broadcast %122 : f32 to vector<1x1xf32>
      %124 = arith.addf %118, %123 : vector<1x1xf32>
      %cst_56 = arith.constant 5.000000e-01 : f32
      %125 = vector.broadcast %cst_56 : f32 to vector<1x1xf32>
      %126 = arith.mulf %125, %124 : vector<1x1xf32>
      %cst_57 = arith.constant 2.000000e+00 : f32
      %127 = vector.broadcast %cst_57 : f32 to vector<1x1xf32>
      %128 = arith.divf %126, %127 : vector<1x1xf32>
      %c0_58 = arith.constant 0 : index
      %c0_59 = arith.constant 0 : index
      %129 = vector.load %arg5[%c0_58, %c0_59] : memref<1x1xf32, #tpu.memory_space<vmem>>, vector<1x1xf32>
      tpu.vector_store %arg5[%c0_58, %c0_59], %128 {strides = array<i32>} : memref<1x1xf32, #tpu.memory_space<vmem>>, vector<1x1xf32>,
    } else {
    }
    return
  }
  func.func @transform_0(%arg0: i32, %arg1: i32) -> i32 {
    %c0_i32 = arith.constant 0 : i32
    %c0_i32_0 = arith.constant 0 : i32
    return %c0_i32 : i32
  }
  func.func @transform_1(%arg0: i32, %arg1: i32) -> (i32, i32) {
    %c0_i32 = arith.constant 0 : i32
    %c0_i32_0 = arith.constant 0 : i32
    return %arg0, %c0_i32 : i32, i32
  }
  func.func @transform_2(%arg0: i32, %arg1: i32) -> (i32, i32) {
    %c0_i32 = arith.constant 0 : i32
    %c0_i32_0 = arith.constant 0 : i32
    return %arg1, %c0_i32 : i32, i32
  }
  func.func @transform_3(%arg0: i32, %arg1: i32) -> (i32, i32) {
    %c0_i32 = arith.constant 0 : i32
    %c0_i32_0 = arith.constant 0 : i32
    %c0_i32_1 = arith.constant 0 : i32
    return %c0_i32, %c0_i32_0 : i32, i32
  }
}

</mosaic_0001>

<llo_original>
// kernel: symmetric_siamese_forward.1
$region0: #{symmetric_siamese_forward.1}
  #allocation0 [shape = 'u32[]', space=smem, size = 0x4, offset = 0x4, fixed_abs, tag = 'smem constant byte address 0x4 - core index']
  #allocation1 [shape = 'u32[144,128]{1,0:T(1,128)}', space=vmem, size = 0x12000, scoped, tag = 'internal scratch']
  #allocation2 [shape = 'f32[8,1]{1,0:T(8,128)}', space=vmem, size = 0x1000, scoped, tag = 'scratch operand']
  #allocation3 [shape = 'f32[8,1]{1,0:T(8,128)}', space=vmem, size = 0x1000, scoped, tag = 'scratch operand']
  #allocation4 [shape = 'f32[1,1,8]{2,1,0:T(1,128)}', space=vmem, size = 0x200, scoped, tag = 'scratch operand']
  #allocation5 [shape = 'f32[1,1,8]{2,1,0:T(1,128)}', space=vmem, size = 0x200, scoped, tag = 'scratch operand']
  #allocation6 [shape = 'f32[1,1]{1,0:T(1,128)}', space=vmem, size = 0x200, scoped, tag = 'scratch operand']
  #allocation7 [shape = 'f32[1]{0:T(128)S(6)}', space=smem, size = 0x200, scoped, tag = 'scoped memory for symmetric_siamese_forward.1']
  %s0 = inlined_call_operand.<no memory space> [shape: f32[1], index: 0, kind: input, shape index: {}]
  %s1 = inlined_call_operand.hbm [shape: f32[8,128], index: 1, kind: input, shape index: {}]
  %s2 = inlined_call_operand.hbm [shape: f32[8,128], index: 2, kind: input, shape index: {}]
  %s3 = inlined_call_operand.hbm [shape: f32[1,1], index: 3, kind: output, shape index: {}]
  %s4 = sld [smem:[#allocation0]]
  $region54: #{symmetric_siamese_forward.1} parent=0
    _
  %s6 = ssub.s32 1, %s4
  %s7 = scalar_select 0, %s6, %s4
  %8 = sst [smem:[#allocation7]] %s0
  $region1: #{symmetric_siamese_forward.1} parent=0
    #allocation8 [shape = 'u8[4096]{0}', space=vmem, size = 0x1000, scoped, tag = 'input window, operand 1, single buffered']
    #allocation9 [shape = 's32[1]{0}', space=sflag, size = 0x4, scoped, tag = 'scoped memory for symmetric_siamese_forward.1']
    #allocation10 [shape = 's32[1]{0}', space=sflag, size = 0x4, scoped, tag = 'scoped memory for symmetric_siamese_forward.1']
    #allocation11 [shape = 'u8[4096]{0}', space=vmem, size = 0x1000, scoped, tag = 'input window, operand 2, single buffered']
    #allocation12 [shape = 's32[1]{0}', space=sflag, size = 0x4, scoped, tag = 'scoped memory for symmetric_siamese_forward.1']
    #allocation13 [shape = 'u8[512]{0}', space=vmem, size = 0x400, scoped, tag = 'output window, operand 0, single buffered']
    %9 = vsyncpa [#allocation9], 0
    %10 = vsyncpa [#allocation12], 0
    %11 = vsyncpa [#allocation10], 0
    // Predicated region
    $region2: #{symmetric_siamese_forward.1} parent=1 // pred_check
      _
    $region3: #{symmetric_siamese_forward.1} parent=1 // pred_check_branch
      %13 = sbr.rel (0) target = $region5
    $region4: #{symmetric_siamese_forward.1} parent=1 // pred_region
      _
    $region5: #{symmetric_siamese_forward.1} parent=1 // pred_fallthru
      _
    // Predicated region
    $region6: #{symmetric_siamese_forward.1} parent=1 // pred_check
      _
    $region7: #{symmetric_siamese_forward.1} parent=1 // pred_check_branch
      %15 = sbr.rel (0) target = $region9
    $region8: #{symmetric_siamese_forward.1} parent=1 // pred_region
      %s17 = ssub.s32 128, 128
      %18 = vsyncadd [#allocation9], %s17
      %s20 = sshll.u32 [#allocation8], 4
      %s21 = int_to_ptr.vmem [resolvable:$true] %s20
      %23 = dma.hbm_to_vmem [thread:$0]  %s1, 128, %s21, [#allocation9]
    $region9: #{symmetric_siamese_forward.1} parent=1 // pred_fallthru
      _
    // Predicated region
    $region10: #{symmetric_siamese_forward.1} parent=1 // pred_check
      _
    $region11: #{symmetric_siamese_forward.1} parent=1 // pred_check_branch
      %25 = sbr.rel (0) target = $region13
    $region12: #{symmetric_siamese_forward.1} parent=1 // pred_region
      %s27 = ssub.s32 128, 128
      %28 = vsyncadd [#allocation12], %s27
      %s30 = sshll.u32 [#allocation11], 4
      %s31 = int_to_ptr.vmem [resolvable:$true] %s30
      %33 = dma.hbm_to_vmem [thread:$0]  %s2, 128, %s31, [#allocation12]
    $region13: #{symmetric_siamese_forward.1} parent=1 // pred_fallthru
      _
    // Predicated region
    $region14: #{symmetric_siamese_forward.1} parent=1 // pred_check
      _
    $region15: #{symmetric_siamese_forward.1} parent=1 // pred_check_branch
      %35 = sbr.rel (0) target = $region17
    $region16: #{symmetric_siamese_forward.1} parent=1 // pred_region
      %36 = dma.done [#allocation9], 128
    $region17: #{symmetric_siamese_forward.1} parent=1 // pred_fallthru
      _
    // Predicated region
    $region18: #{symmetric_siamese_forward.1} parent=1 // pred_check
      _
    $region19: #{symmetric_siamese_forward.1} parent=1 // pred_check_branch
      %38 = sbr.rel (0) target = $region21
    $region20: #{symmetric_siamese_forward.1} parent=1 // pred_region
      %39 = dma.done [#allocation12], 128
    $region21: #{symmetric_siamese_forward.1} parent=1 // pred_fallthru
      _
    %v41 = vld [vmem:[#allocation8] sm:$0xff]
    %v42 = vld [vmem:[#allocation11] sm:$0xff]
    %v43 = vmul.f32 %v41, %v41
    %44 = vadd.xlane.f32.xlu0 %v43
    %v45 = vpop.xlane.xlu0 %44
    %v46 = vmax.f32 %v45, 1e-24
    %v47 = vrsqrt.pop %v46
    %v48 = vmul.f32 %v41, %v47
    %v49 = vmul.f32 %v42, %v42
    %50 = vadd.xlane.f32.xlu0 %v49
    %v51 = vpop.xlane.xlu0 %50
    %v52 = vmax.f32 %v51, 1e-24
    %v53 = vrsqrt.pop %v52
    %v54 = vmul.f32 %v42, %v53
    %s55 = sld [smem:[#allocation7]]
    %v56 = vstv %s55
    %v57 = vmul.f32 %v56, 1.442695
    %v58 = vpow.pop %v57
    %s59 = vtos %v58
    %v60 = vpack.c.bf16 %v48, %v48
    %v61 = vpack.c.bf16 %v54, %v54
    %62 = vmatprep.subr.bf16.mxu0 0
    %63 = vmatpush1.bf16.xpose.msra.mxu0 %v61
    %64 = vmatprep.subr.bf16.mxu0 0
    %65 = vmatpush1.bf16.xpose.msra.mxu0 0
    %66 = vmatprep.subr.bf16.mxu0 0
    %67 = vmatpush1.bf16.xpose.msra.mxu0 0
    %68 = vmatprep.subr.bf16.mxu0 0
    %69 = vmatpush1.bf16.xpose.msra.mxu0 0
    %70 = vmatprep.subr.bf16.mxu0 0
    %71 = vmatpush1.bf16.xpose.msra.mxu0 0
    %72 = vmatprep.subr.bf16.mxu0 0
    %73 = vmatpush1.bf16.xpose.msra.mxu0 0
    %74 = vmatprep.subr.bf16.mxu0 0
    %75 = vmatpush1.bf16.xpose.msra.mxu0 0
    %76 = vmatprep.subr.bf16.mxu0 0
    %77 = vmatpush1.bf16.xpose.msra.mxu0 0
    %78 = vmatprep.subr.bf16.mxu0 0
    %79 = vmatpush1.bf16.xpose.msra.mxu0 0
    %80 = vmatprep.subr.bf16.mxu0 0
    %81 = vmatpush1.bf16.xpose.msra.mxu0 0
    %82 = vmatprep.subr.bf16.mxu0 0
    %83 = vmatpush1.bf16.xpose.msra.mxu0 0
    %84 = vmatprep.subr.bf16.mxu0 0
    %85 = vmatpush1.bf16.xpose.msra.mxu0 0
    %86 = vmatprep.subr.bf16.mxu0 0
    %87 = vmatpush1.bf16.xpose.msra.mxu0 0
    %88 = vmatprep.subr.bf16.mxu0 0
    %89 = vmatpush1.bf16.xpose.msra.mxu0 0
    %90 = vmatprep.subr.bf16.mxu0 0
    %91 = vmatpush1.bf16.xpose.msra.mxu0 0
    %92 = vmatprep.subr.bf16.mxu0 0
    %93 = vmatpush1.bf16.xpose.msra.mxu0 0
    %94 = vmatprep.mubr.bf16.mxu0 0
    %95 = vmatmul.mubr.bf16.gmra.mrb[0].mxu0 %v60
    %v96 = vpop.f32.mrb[0].mxu0
    %v97 = vadd.f32 0.0, %v96
    %v98 = vpop.f32.mrb[0].mxu0
    %v99 = vpop.f32.mrb[0].mxu0
    %v100 = vpop.f32.mrb[0].mxu0
    %101 = vdwg.mxu0
    %v102 = vstv %s59
    %v103 = vmul.f32 %v97, %v102
    %s104 = smul.u32 0, 8
    %v105 = vlaneseq
    %v106 = vshrl.u32 %v105, 7
    %v107 = vstv %s104
    %v108 = vadd.s32 %v107, %v106
    %s109 = smul.u32 0, 8
    %v110 = vlaneseq
    %v111 = vand.u32 %v110, 127
    %v112 = vstv %s109
    %v113 = vadd.s32 %v112, %v111
    %vm114 = vcmp.lt.s32.totalorder %v113, 2
    %v115 = vsel %vm114, %v103, -1e+30
    %vm116 = vcmp.lt.s32.totalorder %v108, 2
    %v117 = vsel %vm116, %v103, -1e+30
    %p118 = scmp.eq.s32.totalorder 0, 0
    %p119 = scmp.eq.s32.totalorder 0, 0
    %p120 = pnand %p118, %p119
    %p121 = pneg %p120
    // Predicated region
    $region22: #{symmetric_siamese_forward.1} parent=1 // pred_check
      _
    $region23: #{symmetric_siamese_forward.1} parent=1 // pred_check_branch
      %123 = sbr.rel (%p120) target = $region25
    $region24: #{symmetric_siamese_forward.1} parent=1 // pred_region
      %vm124 = vcmask 0
      %125 = vst.msk [vmem:[#allocation6] sm:$0x1] %vm124, 0.0
    $region25: #{symmetric_siamese_forward.1} parent=1 // pred_fallthru
      _
    // Predicated region
    $region26: #{symmetric_siamese_forward.1} parent=1 // pred_check
      %p126 = pneg %p119
    $region27: #{symmetric_siamese_forward.1} parent=1 // pred_check_branch
      %128 = sbr.rel (%p126) target = $region29
    $region28: #{symmetric_siamese_forward.1} parent=1 // pred_region
      %vm129 = vcmask 7168
      %130 = vst.msk [vmem:[#allocation2] sm:$0xff] %vm129, -inf
      %131 = vst.msk [vmem:[#allocation3] sm:$0xff] %vm129, 0.0
    $region29: #{symmetric_siamese_forward.1} parent=1 // pred_fallthru
      _
    // Predicated region
    $region30: #{symmetric_siamese_forward.1} parent=1 // pred_check
      %p132 = pneg %p118
    $region31: #{symmetric_siamese_forward.1} parent=1 // pred_check_branch
      %134 = sbr.rel (%p132) target = $region33
    $region32: #{symmetric_siamese_forward.1} parent=1 // pred_region
      %vm135 = vcmask 57344
      %136 = vst.msk [vmem:[#allocation4] sm:$0x1] %vm135, -inf
      %137 = vst.msk [vmem:[#allocation5] sm:$0x1] %vm135, 0.0
    $region33: #{symmetric_siamese_forward.1} parent=1 // pred_fallthru
      _
    %v138 = vld [vmem:[#allocation2] sm:$0xff]
    %vm139 = vcmask 64512
    %v140 = vsel %vm139, %v115, -inf
    %141 = vmax.xlane.f32.xlu0 %v140
    %v142 = vpop.xlane.xlu0 %141
    %v143 = vmax.f32 %v138, %v142
    %v144 = vld [vmem:[#allocation3] sm:$0xff]
    %v145 = vsub.f32 %v138, %v143
    %v146 = vmul.f32 %v145, 1.442695
    %v147 = vpow.pop %v146
    %v148 = vmul.f32 %v144, %v147
    %150 = vset.pattern.permute.xlu0 0
    %151 = vperm.xlu0 %150, %v143
    %v152 = vpop.permute.xlu0 %151
    %v154 = vsub.f32 %v115, %v152
    %v155 = vmul.f32 %v154, 1.442695
    %v156 = vpow.pop %v155
    %v157 = vsel %vm139, %v156, 0.0
    %158 = vadd.xlane.f32.xlu0 %v157
    %v159 = vpop.xlane.xlu0 %158
    %v160 = vadd.f32 %v148, %v159
    %vm161 = vcmask 7168
    %162 = vst.msk [vmem:[#allocation3] sm:$0xff] %vm161, %v160
    %163 = vst.msk [vmem:[#allocation2] sm:$0xff] %vm161, %v143
    %v164 = vld [vmem:[#allocation4] sm:$0x1]
    %v165 = vsel %vm139, %v117, -inf
    %v166 = vrot.slane %v165, 4
    %v167 = vmax.f32 %v165, %v166
    %v168 = vrot.slane %v167, 2
    %v169 = vmax.f32 %v167, %v168
    %v170 = vrot.slane %v169, 1
    %v171 = vmax.f32 %v169, %v170
    %v172 = vmax.f32 %v164, %v171
    %v173 = vld [vmem:[#allocation5] sm:$0x1]
    %v174 = vsub.f32 %v164, %v172
    %v175 = vmul.f32 %v174, 1.442695
    %v176 = vpow.pop %v175
    %v177 = vmul.f32 %v173, %v176
    %v179 = vlaneseq
    %v180 = vshrl.u32 %v179, 7
    %v181 = vsub.s32 0, %v180
    %v182 = vrot.slane %v172, %v181
    %v184 = vsub.f32 %v117, %v182
    %v185 = vmul.f32 %v184, 1.442695
    %v186 = vpow.pop %v185
    %v187 = vsel %vm139, %v186, 0.0
    %v188 = vrot.slane %v187, 4
    %v189 = vadd.f32 %v187, %v188
    %v190 = vrot.slane %v189, 2
    %v191 = vadd.f32 %v189, %v190
    %v192 = vrot.slane %v191, 1
    %v193 = vadd.f32 %v191, %v192
    %v194 = vadd.f32 %v177, %v193
    %vm195 = vcmask 57344
    %196 = vst.msk [vmem:[#allocation5] sm:$0x1] %vm195, %v194
    %197 = vst.msk [vmem:[#allocation4] sm:$0x1] %vm195, %v172
    %p198 = scmp.eq.s32.totalorder 0, 0
    // Predicated region
    $region34: #{symmetric_siamese_forward.1} parent=1 // pred_check
      %p199 = pneg %p198
    $region35: #{symmetric_siamese_forward.1} parent=1 // pred_check_branch
      %201 = sbr.rel (%p199) target = $region37
    $region36: #{symmetric_siamese_forward.1} parent=1 // pred_region
      %vm202 = vcmp.eq.s32.totalorder %v106, %v111
      %v203 = vld [vmem:[#allocation6] sm:$0x1]
      %v204 = vsel %vm202, %v103, 0.0
      %v205 = vsel %vm139, %v204, 0.0
      %206 = vadd.xlane.f32.xlu0 %v205
      %v207 = vpop.xlane.xlu0 %206
      %v208 = vrot.slane %v207, 4
      %v209 = vadd.f32 %v207, %v208
      %v210 = vrot.slane %v209, 2
      %v211 = vadd.f32 %v209, %v210
      %v212 = vrot.slane %v211, 1
      %v213 = vadd.f32 %v211, %v212
      %s214 = vtos %v213
      %s215 = smul.f32 %s214, 2.0
      %v216 = vstv %s215
      %v217 = vsub.f32 %v203, %v216
      %vm218 = vcmask 0
      %219 = vst.msk [vmem:[#allocation6] sm:$0x1] %vm218, %v217
    $region37: #{symmetric_siamese_forward.1} parent=1 // pred_fallthru
      _
    // Predicated region
    $region38: #{symmetric_siamese_forward.1} parent=1 // pred_check
      %p220 = pneg %p119
    $region39: #{symmetric_siamese_forward.1} parent=1 // pred_check_branch
      %222 = sbr.rel (%p220) target = $region41
    $region40: #{symmetric_siamese_forward.1} parent=1 // pred_region
      %v223 = vld [vmem:[#allocation2] sm:$0xff]
      %v224 = vld [vmem:[#allocation3] sm:$0xff]
      %v225 = vlog2.pop %v224
      %v226 = vmul.f32 %v225, 0.6931472
      %v227 = vadd.f32 %v223, %v226
      %v228 = vsel %vm116, %v227, 0.0
      %v229 = vld [vmem:[#allocation6] sm:$0x1]
      %v230 = vsel %vm161, %v228, 0.0
      %231 = vadd.xlane.f32.xlu0 %v230
      %v232 = vpop.xlane.xlu0 %231
      %v233 = vrot.slane %v232, 4
      %v234 = vadd.f32 %v232, %v233
      %v235 = vrot.slane %v234, 2
      %v236 = vadd.f32 %v234, %v235
      %v237 = vrot.slane %v236, 1
      %v238 = vadd.f32 %v236, %v237
      %s239 = vtos %v238
      %v240 = vstv %s239
      %v241 = vadd.f32 %v229, %v240
      %vm242 = vcmask 0
      %243 = vst.msk [vmem:[#allocation6] sm:$0x1] %vm242, %v241
    $region41: #{symmetric_siamese_forward.1} parent=1 // pred_fallthru
      _
    // Predicated region
    $region42: #{symmetric_siamese_forward.1} parent=1 // pred_check
      _
    $region43: #{symmetric_siamese_forward.1} parent=1 // pred_check_branch
      %245 = sbr.rel (%p120) target = $region45
    $region44: #{symmetric_siamese_forward.1} parent=1 // pred_region
      %v246 = vld [vmem:[#allocation4] sm:$0x1]
      %v247 = vld [vmem:[#allocation5] sm:$0x1]
      %v248 = vlog2.pop %v247
      %v249 = vmul.f32 %v248, 0.6931472
      %v250 = vadd.f32 %v246, %v249
      %vm251 = vcmp.lt.s32.totalorder %v111, 2
      %v252 = vsel %vm251, %v250, 0.0
      %v253 = vld [vmem:[#allocation6] sm:$0x1]
      %v254 = vsel %vm195, %v252, 0.0
      %255 = vadd.xlane.f32.xlu0 %v254
      %v256 = vpop.xlane.xlu0 %255
      %v257 = vrot.slane %v256, 4
      %v258 = vadd.f32 %v256, %v257
      %v259 = vrot.slane %v258, 2
      %v260 = vadd.f32 %v258, %v259
      %v261 = vrot.slane %v260, 1
      %v262 = vadd.f32 %v260, %v261
      %s263 = vtos %v262
      %v264 = vstv %s263
      %v265 = vadd.f32 %v253, %v264
      %v266 = vmul.f32 %v265, 0.5
      %v267 = vrcp.pop 2.0
      %v268 = vmul.f32 %v266, %v267
      %vm269 = vcmask 0
      %270 = vst.msk [vmem:[#allocation13] sm:$0x1] %vm269, %v268
    $region45: #{symmetric_siamese_forward.1} parent=1 // pred_fallthru
      _
    // Predicated region
    $region46: #{symmetric_siamese_forward.1} parent=1 // pred_check
      _
    $region47: #{symmetric_siamese_forward.1} parent=1 // pred_check_branch
      %272 = sbr.rel (0) target = $region49
    $region48: #{symmetric_siamese_forward.1} parent=1 // pred_region
      %s274 = ssub.s32 16, 16
      %275 = vsyncadd [#allocation10], %s274
      %s277 = sshll.u32 [#allocation13], 4
      %s278 = int_to_ptr.vmem [resolvable:$true] %s277
      %280 = dma.vmem_to_hbm [thread:$0]  %s278, 16, %s3, [#allocation10]
    $region49: #{symmetric_siamese_forward.1} parent=1 // pred_fallthru
      _
    // Predicated region
    $region50: #{symmetric_siamese_forward.1} parent=1 // pred_check
      _
    $region51: #{symmetric_siamese_forward.1} parent=1 // pred_check_branch
      %282 = sbr.rel (0) target = $region53
    $region52: #{symmetric_siamese_forward.1} parent=1 // pred_region
      %283 = dma.done [#allocation10], 16
    $region53: #{symmetric_siamese_forward.1} parent=1 // pred_fallthru
      _
    %284 = vsyncpa [#allocation9], 1
    %285 = vsyncpa [#allocation12], 1
    %286 = vsyncpa [#allocation10], 1

</llo_original>
